<compile_context>
chip_gen: v7x
topology: tpu7x:2x2x1
jax: 0.10.0
libtpu: 0.0.40
codegen_flags: <defaults>
</compile_context>

<pallas_src>
import functools

import jax
import jax.numpy as jnp
from jax.experimental import pallas as pl
from jax.experimental.pallas import tpu as pltpu

_LANE = 128


def _cdiv(a, b):
    return (a + b - 1) // b


def _round_up(x, m):
    return _cdiv(x, m) * m


def _combined_loss_kernel(x_ref, t_ref, out_ref,
                          bce_acc, inter_acc, sig_acc, tgt_acc,
                          *, nc, hw, tr, tc):
    i = pl.program_id(0)
    k = pl.program_id(1)

    @pl.when(k == 0)
    def _init():
        bce_acc[...] = jnp.zeros_like(bce_acc)
        inter_acc[...] = jnp.zeros_like(inter_acc)
        sig_acc[...] = jnp.zeros_like(sig_acc)
        tgt_acc[...] = jnp.zeros_like(tgt_acc)

    need_row_mask = (nc % tr) != 0
    need_col_mask = (hw % tc) != 0

    row_valid = None
    if need_row_mask:
        row_iota = jax.lax.broadcasted_iota(jnp.int32, (tr, _LANE), 0)
        row_valid = row_iota < (nc - i * tr)

    lane_iota = None
    if need_col_mask:
        lane_iota = jax.lax.broadcasted_iota(jnp.int32, (tr, _LANE), 1)

    nchunks = tc // _LANE
    for j in range(nchunks):
        sl = slice(j * _LANE, (j + 1) * _LANE)
        x = x_ref[:, sl].astype(jnp.float32)
        t = t_ref[:, sl].astype(jnp.float32)

        if need_col_mask or need_row_mask:
            m = None
            if need_col_mask:
                m = lane_iota < (hw - k * tc - j * _LANE)
            if need_row_mask:
                m = row_valid if m is None else jnp.logical_and(m, row_valid)
            # Safe finite pad logit / zero target: exact-zero contribution to
            # all four sums; also neutralizes OOB garbage (even NaN).
            x = jnp.where(m, x, -30.0)
            t = jnp.where(m, t, 0.0)

        # Single exp per element (EUP): e = exp(-|x|).
        e = jnp.exp(-jnp.abs(x))
        one_pe = 1.0 + e
        # Approx EUP reciprocal + one VPU Newton step (~1e-7 rel err).
        r = pl.reciprocal(one_pe, approx=True)
        s_abs = r * (2.0 - one_pe * r)
        s = jnp.where(x >= 0.0, s_abs, 1.0 - s_abs)
        # Numerically stable BCE-with-logits; e in (0, 1] so log(1+e) is safe.
        bce = jnp.maximum(x, 0.0) - x * t + jnp.log(one_pe)

        bce_acc[...] += bce
        inter_acc[...] += s * t
        sig_acc[...] += s
        tgt_acc[...] += t

    @pl.when(k == pl.num_programs(1) - 1)
    def _store():
        # One unmasked, lane-dense (TR, 512) store per row-tile.
        out_ref[:, 0 * _LANE:1 * _LANE] = bce_acc[...]
        out_ref[:, 1 * _LANE:2 * _LANE] = inter_acc[...]
        out_ref[:, 2 * _LANE:3 * _LANE] = sig_acc[...]
        out_ref[:, 3 * _LANE:4 * _LANE] = tgt_acc[...]


@functools.partial(jax.jit, static_argnames=("bce_weight",))
def combined_loss(inputs, targets, bce_weight=0.5):
    """inputs: (N, C, H, W) logits; targets: (N, C, H, W) {0,1} masks.

    Inputs are streamed in their native dtype (pass bf16 logits / int8 or bool
    masks to cut HBM traffic on v5e/v6e); all math is done in f32 inside the
    kernel.  Returns (loss, dice_score.mean()) like the PyTorch module.
    """
    n, c, h, w = inputs.shape
    nc, hw = n * c, h * w

    x2 = inputs.reshape(nc, hw)   # free reshape, no copy
    t2 = targets.reshape(nc, hw)

    # Row tiles: <=256 rows each, at least 2 tiles when nc >= 16 so both v7x
    # TensorCores get work; rounded to the sublane multiple of 8.
    n_row_tiles = max(_cdiv(nc, 256), min(2, _cdiv(nc, 8)))
    tr = _round_up(_cdiv(nc, n_row_tiles), 8)

    # Reduction (H*W) tile: ~4 MiB per input per pipeline buffer, lane-dense
    # multiple of 128, capped at 64 chunks (unrolled in-kernel loop) and at the
    # spatial extent.
    itemsize = max(x2.dtype.itemsize, t2.dtype.itemsize)
    budget = 4 << 20
    tc = max(_LANE, (budget // (tr * itemsize)) // _LANE * _LANE)
    tc = min(tc, 64 * _LANE)
    tc = min(tc, _round_up(hw, _LANE))

    grid = (_cdiv(nc, tr), _cdiv(hw, tc))
    nc_out = grid[0] * tr

    tile_in_bytes = tr * tc * (x2.dtype.itemsize + t2.dtype.itemsize)
    vmem_bytes = (2 * tile_in_bytes            # double-buffered inputs
                  + 2 * tr * 4 * _LANE * 4     # double-buffered output slab
                  + 4 * tr * _LANE * 4         # accumulator scratch
                  + (8 << 20))                 # headroom for temporaries
    vmem_limit = int(min(max(vmem_bytes, 16 << 20), 48 << 20))

    kernel = functools.partial(_combined_loss_kernel,
                               nc=nc, hw=hw, tr=tr, tc=tc)

    out_slab = pl.pallas_call(
        kernel,
        out_shape=jax.ShapeDtypeStruct((nc_out, 4 * _LANE), jnp.float32),
        grid=grid,
        in_specs=[
            pl.BlockSpec((tr, tc), lambda i, k: (i, k)),
            pl.BlockSpec((tr, tc), lambda i, k: (i, k)),
        ],
        out_specs=pl.BlockSpec((tr, 4 * _LANE), lambda i, k: (i, 0)),
        scratch_shapes=[pltpu.VMEM((tr, _LANE), jnp.float32)] * 4,
        compiler_params=pltpu.CompilerParams(
            dimension_semantics=("parallel", "arbitrary"),
            vmem_limit_bytes=vmem_limit,
        ),
    )(x2, t2)

    # Final cheap cross-lane reduce of the packed per-row partial sums (XLA).
    sums = out_slab[:nc].reshape(nc, 4, _LANE).sum(axis=-1)
    bce_sum = jnp.sum(sums[:, 0])
    inter = sums[:, 1]
    union = sums[:, 2] + sums[:, 3]

    smooth = 1.0
    bce_loss = bce_sum / (nc * hw)                 # mean over all elements
    dice_score = (2.0 * inter + smooth) / (union + smooth)
    dice_mean = jnp.mean(dice_score)
    dice_loss = 1.0 - dice_mean
    loss = bce_weight * bce_loss + (1.0 - bce_weight) * dice_loss
    return loss, dice_mean


def _reference(inputs, targets, bce_weight=0.5):
    x = inputs.astype(jnp.float32)
    t = targets.astype(jnp.float32)
    bce = jnp.mean(jnp.maximum(x, 0.0) - x * t + jnp.log1p(jnp.exp(-jnp.abs(x))))
    s = jax.nn.sigmoid(x)
    smooth = 1.0
    inter = jnp.sum(s * t, axis=(2, 3))
    union = jnp.sum(s, axis=(2, 3)) + jnp.sum(t, axis=(2, 3))
    dice_score = (2.0 * inter + smooth) / (union + smooth)
    dice_mean = jnp.mean(dice_score)
    loss = bce_weight * bce + (1.0 - bce_weight) * (1.0 - dice_mean)
    return loss, dice_mean


if __name__ == "__main__":
    key = jax.random.PRNGKey(0)
    k1, k2 = jax.random.split(key)

    N, C, H, W = 2, 4, 16, 16
    logits = jax.random.normal(k1, (N, C, H, W), dtype=jnp.float32)
    targets = (jax.random.uniform(k2, (N, C, H, W)) > 0.5).astype(jnp.float32)

    loss, dice_mean = jax.block_until_ready(combined_loss(logits, targets))
    ref_loss, ref_dice = _reference(logits, targets)

    assert jnp.allclose(loss, ref_loss, atol=1e-5), (loss, ref_loss)
    assert jnp.allclose(dice_mean, ref_dice, atol=1e-5), (dice_mean, ref_dice)
    print("KERNEL_OK")
</pallas_src>

<mosaic_0001>
module attributes {stable_mosaic.version = 11 : i64} {
  func.func @_combined_loss_kernel(%arg0: i32, %arg1: i32, %arg2: memref<8x256xf32, #tpu.memory_space<vmem>>, %arg3: memref<8x256xf32, #tpu.memory_space<vmem>>, %arg4: memref<8x512xf32, #tpu.memory_space<vmem>>, %arg5: memref<8x128xf32, #tpu.memory_space<vmem>>, %arg6: memref<8x128xf32, #tpu.memory_space<vmem>>, %arg7: memref<8x128xf32, #tpu.memory_space<vmem>>, %arg8: memref<8x128xf32, #tpu.memory_space<vmem>>) attributes {dimension_semantics = [#tpu.dimension_semantics<parallel>, #tpu.dimension_semantics<arbitrary>], iteration_bounds = array<i64: 1, 1>, scalar_prefetch = 0 : i64, scratch_operands = 4 : i64, tpu.core_type = #tpu.core_type<tc>, window_params = [{transform_indices = @transform_0, window_bounds = array<i64: 8, 256>}, {transform_indices = @transform_1, window_bounds = array<i64: 8, 256>}, {transform_indices = @transform_2, window_bounds = array<i64: 8, 512>}]} {
    %c0_i32 = arith.constant 0 : i32
    %0 = arith.cmpi eq, %arg1, %c0_i32 : i32
    %1 = arith.extui %0 : i1 to i32
    %c0_i32_0 = arith.constant 0 : i32
    %2 = arith.cmpi ne, %1, %c0_i32_0 : i32
    scf.if %2 {
      %cst_52 = arith.constant 0.000000e+00 : f32
      %80 = vector.broadcast %cst_52 : f32 to vector<8x128xf32>
      %c0_53 = arith.constant 0 : index
      %c0_54 = arith.constant 0 : index
      %81 = vector.load %arg5[%c0_53, %c0_54] : memref<8x128xf32, #tpu.memory_space<vmem>>, vector<8x128xf32>
      tpu.vector_store %arg5[%c0_53, %c0_54], %80 {strides = array<i32>} : memref<8x128xf32, #tpu.memory_space<vmem>>, vector<8x128xf32>,
      %cst_55 = arith.constant 0.000000e+00 : f32
      %82 = vector.broadcast %cst_55 : f32 to vector<8x128xf32>
      %c0_56 = arith.constant 0 : index
      %c0_57 = arith.constant 0 : index
      %83 = vector.load %arg6[%c0_56, %c0_57] : memref<8x128xf32, #tpu.memory_space<vmem>>, vector<8x128xf32>
      tpu.vector_store %arg6[%c0_56, %c0_57], %82 {strides = array<i32>} : memref<8x128xf32, #tpu.memory_space<vmem>>, vector<8x128xf32>,
      %cst_58 = arith.constant 0.000000e+00 : f32
      %84 = vector.broadcast %cst_58 : f32 to vector<8x128xf32>
      %c0_59 = arith.constant 0 : index
      %c0_60 = arith.constant 0 : index
      %85 = vector.load %arg7[%c0_59, %c0_60] : memref<8x128xf32, #tpu.memory_space<vmem>>, vector<8x128xf32>
      tpu.vector_store %arg7[%c0_59, %c0_60], %84 {strides = array<i32>} : memref<8x128xf32, #tpu.memory_space<vmem>>, vector<8x128xf32>,
      %cst_61 = arith.constant 0.000000e+00 : f32
      %86 = vector.broadcast %cst_61 : f32 to vector<8x128xf32>
      %c0_62 = arith.constant 0 : index
      %c0_63 = arith.constant 0 : index
      %87 = vector.load %arg8[%c0_62, %c0_63] : memref<8x128xf32, #tpu.memory_space<vmem>>, vector<8x128xf32>
      tpu.vector_store %arg8[%c0_62, %c0_63], %86 {strides = array<i32>} : memref<8x128xf32, #tpu.memory_space<vmem>>, vector<8x128xf32>,
    } else {
    }
    %c0 = arith.constant 0 : index
    %c0_1 = arith.constant 0 : index
    %3 = vector.load %arg2[%c0, %c0_1] : memref<8x256xf32, #tpu.memory_space<vmem>>, vector<8x128xf32>
    %c0_2 = arith.constant 0 : index
    %c0_3 = arith.constant 0 : index
    %4 = vector.load %arg3[%c0_2, %c0_3] : memref<8x256xf32, #tpu.memory_space<vmem>>, vector<8x128xf32>
    %5 = math.absf %3 : vector<8x128xf32>
    %cst = arith.constant 0.000000e+00 : f32
    %6 = vector.broadcast %cst : f32 to vector<8x128xf32>
    %7 = arith.subf %6, %5 : vector<8x128xf32>
    %8 = math.exp %7 : vector<8x128xf32>
    %cst_4 = arith.constant 1.000000e+00 : f32
    %9 = vector.broadcast %cst_4 : f32 to vector<8x128xf32>
    %10 = arith.addf %9, %8 : vector<8x128xf32>
    %11 = tpu.reciprocal %10 {approx = true} : vector<8x128xf32> -> vector<8x128xf32>
    %12 = arith.mulf %10, %11 : vector<8x128xf32>
    %cst_5 = arith.constant 2.000000e+00 : f32
    %13 = vector.broadcast %cst_5 : f32 to vector<8x128xf32>
    %14 = arith.subf %13, %12 : vector<8x128xf32>
    %15 = arith.mulf %11, %14 : vector<8x128xf32>
    %cst_6 = arith.constant 0.000000e+00 : f32
    %16 = vector.broadcast %cst_6 : f32 to vector<8x128xf32>
    %17 = arith.cmpf oge, %3, %16 : vector<8x128xf32>
    %cst_7 = arith.constant 1.000000e+00 : f32
    %18 = vector.broadcast %cst_7 : f32 to vector<8x128xf32>
    %19 = arith.subf %18, %15 : vector<8x128xf32>
    %20 = arith.select %17, %15, %19 : vector<8x128xi1>, vector<8x128xf32>
    %cst_8 = arith.constant 0.000000e+00 : f32
    %21 = vector.broadcast %cst_8 : f32 to vector<8x128xf32>
    %22 = arith.maximumf %3, %21 : vector<8x128xf32>
    %23 = arith.mulf %3, %4 : vector<8x128xf32>
    %24 = arith.subf %22, %23 : vector<8x128xf32>
    %25 = math.log %10 : vector<8x128xf32>
    %26 = arith.addf %24, %25 : vector<8x128xf32>
    %c0_9 = arith.constant 0 : index
    %c0_10 = arith.constant 0 : index
    %27 = vector.load %arg5[%c0_9, %c0_10] : memref<8x128xf32, #tpu.memory_space<vmem>>, vector<8x128xf32>
    %28 = arith.addf %27, %26 : vector<8x128xf32>
    %c0_11 = arith.constant 0 : index
    %c0_12 = arith.constant 0 : index
    %29 = vector.load %arg5[%c0_11, %c0_12] : memref<8x128xf32, #tpu.memory_space<vmem>>, vector<8x128xf32>
    tpu.vector_store %arg5[%c0_11, %c0_12], %28 {strides = array<i32>} : memref<8x128xf32, #tpu.memory_space<vmem>>, vector<8x128xf32>,
    %c0_13 = arith.constant 0 : index
    %c0_14 = arith.constant 0 : index
    %30 = vector.load %arg6[%c0_13, %c0_14] : memref<8x128xf32, #tpu.memory_space<vmem>>, vector<8x128xf32>
    %31 = arith.mulf %20, %4 : vector<8x128xf32>
    %32 = arith.addf %30, %31 : vector<8x128xf32>
    %c0_15 = arith.constant 0 : index
    %c0_16 = arith.constant 0 : index
    %33 = vector.load %arg6[%c0_15, %c0_16] : memref<8x128xf32, #tpu.memory_space<vmem>>, vector<8x128xf32>
    tpu.vector_store %arg6[%c0_15, %c0_16], %32 {strides = array<i32>} : memref<8x128xf32, #tpu.memory_space<vmem>>, vector<8x128xf32>,
    %c0_17 = arith.constant 0 : index
    %c0_18 = arith.constant 0 : index
    %34 = vector.load %arg7[%c0_17, %c0_18] : memref<8x128xf32, #tpu.memory_space<vmem>>, vector<8x128xf32>
    %35 = arith.addf %34, %20 : vector<8x128xf32>
    %c0_19 = arith.constant 0 : index
    %c0_20 = arith.constant 0 : index
    %36 = vector.load %arg7[%c0_19, %c0_20] : memref<8x128xf32, #tpu.memory_space<vmem>>, vector<8x128xf32>
    tpu.vector_store %arg7[%c0_19, %c0_20], %35 {strides = array<i32>} : memref<8x128xf32, #tpu.memory_space<vmem>>, vector<8x128xf32>,
    %c0_21 = arith.constant 0 : index
    %c0_22 = arith.constant 0 : index
    %37 = vector.load %arg8[%c0_21, %c0_22] : memref<8x128xf32, #tpu.memory_space<vmem>>, vector<8x128xf32>
    %38 = arith.addf %37, %4 : vector<8x128xf32>
    %c0_23 = arith.constant 0 : index
    %c0_24 = arith.constant 0 : index
    %39 = vector.load %arg8[%c0_23, %c0_24] : memref<8x128xf32, #tpu.memory_space<vmem>>, vector<8x128xf32>
    tpu.vector_store %arg8[%c0_23, %c0_24], %38 {strides = array<i32>} : memref<8x128xf32, #tpu.memory_space<vmem>>, vector<8x128xf32>,
    %c0_25 = arith.constant 0 : index
    %c128 = arith.constant 128 : index
    %40 = vector.load %arg2[%c0_25, %c128] : memref<8x256xf32, #tpu.memory_space<vmem>>, vector<8x128xf32>
    %c0_26 = arith.constant 0 : index
    %c128_27 = arith.constant 128 : index
    %41 = vector.load %arg3[%c0_26, %c128_27] : memref<8x256xf32, #tpu.memory_space<vmem>>, vector<8x128xf32>
    %42 = math.absf %40 : vector<8x128xf32>
    %cst_28 = arith.constant 0.000000e+00 : f32
    %43 = vector.broadcast %cst_28 : f32 to vector<8x128xf32>
    %44 = arith.subf %43, %42 : vector<8x128xf32>
    %45 = math.exp %44 : vector<8x128xf32>
    %cst_29 = arith.constant 1.000000e+00 : f32
    %46 = vector.broadcast %cst_29 : f32 to vector<8x128xf32>
    %47 = arith.addf %46, %45 : vector<8x128xf32>
    %48 = tpu.reciprocal %47 {approx = true} : vector<8x128xf32> -> vector<8x128xf32>
    %49 = arith.mulf %47, %48 : vector<8x128xf32>
    %cst_30 = arith.constant 2.000000e+00 : f32
    %50 = vector.broadcast %cst_30 : f32 to vector<8x128xf32>
    %51 = arith.subf %50, %49 : vector<8x128xf32>
    %52 = arith.mulf %48, %51 : vector<8x128xf32>
    %cst_31 = arith.constant 0.000000e+00 : f32
    %53 = vector.broadcast %cst_31 : f32 to vector<8x128xf32>
    %54 = arith.cmpf oge, %40, %53 : vector<8x128xf32>
    %cst_32 = arith.constant 1.000000e+00 : f32
    %55 = vector.broadcast %cst_32 : f32 to vector<8x128xf32>
    %56 = arith.subf %55, %52 : vector<8x128xf32>
    %57 = arith.select %54, %52, %56 : vector<8x128xi1>, vector<8x128xf32>
    %cst_33 = arith.constant 0.000000e+00 : f32
    %58 = vector.broadcast %cst_33 : f32 to vector<8x128xf32>
    %59 = arith.maximumf %40, %58 : vector<8x128xf32>
    %60 = arith.mulf %40, %41 : vector<8x128xf32>
    %61 = arith.subf %59, %60 : vector<8x128xf32>
    %62 = math.log %47 : vector<8x128xf32>
    %63 = arith.addf %61, %62 : vector<8x128xf32>
    %c0_34 = arith.constant 0 : index
    %c0_35 = arith.constant 0 : index
    %64 = vector.load %arg5[%c0_34, %c0_35] : memref<8x128xf32, #tpu.memory_space<vmem>>, vector<8x128xf32>
    %65 = arith.addf %64, %63 : vector<8x128xf32>
    %c0_36 = arith.constant 0 : index
    %c0_37 = arith.constant 0 : index
    %66 = vector.load %arg5[%c0_36, %c0_37] : memref<8x128xf32, #tpu.memory_space<vmem>>, vector<8x128xf32>
    tpu.vector_store %arg5[%c0_36, %c0_37], %65 {strides = array<i32>} : memref<8x128xf32, #tpu.memory_space<vmem>>, vector<8x128xf32>,
    %c0_38 = arith.constant 0 : index
    %c0_39 = arith.constant 0 : index
    %67 = vector.load %arg6[%c0_38, %c0_39] : memref<8x128xf32, #tpu.memory_space<vmem>>, vector<8x128xf32>
    %68 = arith.mulf %57, %41 : vector<8x128xf32>
    %69 = arith.addf %67, %68 : vector<8x128xf32>
    %c0_40 = arith.constant 0 : index
    %c0_41 = arith.constant 0 : index
    %70 = vector.load %arg6[%c0_40, %c0_41] : memref<8x128xf32, #tpu.memory_space<vmem>>, vector<8x128xf32>
    tpu.vector_store %arg6[%c0_40, %c0_41], %69 {strides = array<i32>} : memref<8x128xf32, #tpu.memory_space<vmem>>, vector<8x128xf32>,
    %c0_42 = arith.constant 0 : index
    %c0_43 = arith.constant 0 : index
    %71 = vector.load %arg7[%c0_42, %c0_43] : memref<8x128xf32, #tpu.memory_space<vmem>>, vector<8x128xf32>
    %72 = arith.addf %71, %57 : vector<8x128xf32>
    %c0_44 = arith.constant 0 : index
    %c0_45 = arith.constant 0 : index
    %73 = vector.load %arg7[%c0_44, %c0_45] : memref<8x128xf32, #tpu.memory_space<vmem>>, vector<8x128xf32>
    tpu.vector_store %arg7[%c0_44, %c0_45], %72 {strides = array<i32>} : memref<8x128xf32, #tpu.memory_space<vmem>>, vector<8x128xf32>,
    %c0_46 = arith.constant 0 : index
    %c0_47 = arith.constant 0 : index
    %74 = vector.load %arg8[%c0_46, %c0_47] : memref<8x128xf32, #tpu.memory_space<vmem>>, vector<8x128xf32>
    %75 = arith.addf %74, %41 : vector<8x128xf32>
    %c0_48 = arith.constant 0 : index
    %c0_49 = arith.constant 0 : index
    %76 = vector.load %arg8[%c0_48, %c0_49] : memref<8x128xf32, #tpu.memory_space<vmem>>, vector<8x128xf32>
    tpu.vector_store %arg8[%c0_48, %c0_49], %75 {strides = array<i32>} : memref<8x128xf32, #tpu.memory_space<vmem>>, vector<8x128xf32>,
    %c0_i32_50 = arith.constant 0 : i32
    %77 = arith.cmpi eq, %arg1, %c0_i32_50 : i32
    %78 = arith.extui %77 : i1 to i32
    %c0_i32_51 = arith.constant 0 : i32
    %79 = arith.cmpi ne, %78, %c0_i32_51 : i32
    scf.if %79 {
      %c0_52 = arith.constant 0 : index
      %c0_53 = arith.constant 0 : index
      %80 = vector.load %arg5[%c0_52, %c0_53] : memref<8x128xf32, #tpu.memory_space<vmem>>, vector<8x128xf32>
      %c0_54 = arith.constant 0 : index
      %c0_55 = arith.constant 0 : index
      %81 = vector.load %arg4[%c0_54, %c0_55] : memref<8x512xf32, #tpu.memory_space<vmem>>, vector<8x128xf32>
      tpu.vector_store %arg4[%c0_54, %c0_55], %80 {strides = array<i32>} : memref<8x512xf32, #tpu.memory_space<vmem>>, vector<8x128xf32>,
      %c0_56 = arith.constant 0 : index
      %c0_57 = arith.constant 0 : index
      %82 = vector.load %arg6[%c0_56, %c0_57] : memref<8x128xf32, #tpu.memory_space<vmem>>, vector<8x128xf32>
      %c0_58 = arith.constant 0 : index
      %c128_59 = arith.constant 128 : index
      %83 = vector.load %arg4[%c0_58, %c128_59] : memref<8x512xf32, #tpu.memory_space<vmem>>, vector<8x128xf32>
      tpu.vector_store %arg4[%c0_58, %c128_59], %82 {strides = array<i32>} : memref<8x512xf32, #tpu.memory_space<vmem>>, vector<8x128xf32>,
      %c0_60 = arith.constant 0 : index
      %c0_61 = arith.constant 0 : index
      %84 = vector.load %arg7[%c0_60, %c0_61] : memref<8x128xf32, #tpu.memory_space<vmem>>, vector<8x128xf32>
      %c0_62 = arith.constant 0 : index
      %c256 = arith.constant 256 : index
      %85 = vector.load %arg4[%c0_62, %c256] : memref<8x512xf32, #tpu.memory_space<vmem>>, vector<8x128xf32>
      tpu.vector_store %arg4[%c0_62, %c256], %84 {strides = array<i32>} : memref<8x512xf32, #tpu.memory_space<vmem>>, vector<8x128xf32>,
      %c0_63 = arith.constant 0 : index
      %c0_64 = arith.constant 0 : index
      %86 = vector.load %arg8[%c0_63, %c0_64] : memref<8x128xf32, #tpu.memory_space<vmem>>, vector<8x128xf32>
      %c0_65 = arith.constant 0 : index
      %c384 = arith.constant 384 : index
      %87 = vector.load %arg4[%c0_65, %c384] : memref<8x512xf32, #tpu.memory_space<vmem>>, vector<8x128xf32>
      tpu.vector_store %arg4[%c0_65, %c384], %86 {strides = array<i32>} : memref<8x512xf32, #tpu.memory_space<vmem>>, vector<8x128xf32>,
    } else {
    }
    return
  }
  func.func @transform_0(%arg0: i32, %arg1: i32) -> (i32, i32) {
    %c0_i32 = arith.constant 0 : i32
    return %arg0, %arg1 : i32, i32
  }
  func.func @transform_1(%arg0: i32, %arg1: i32) -> (i32, i32) {
    %c0_i32 = arith.constant 0 : i32
    return %arg0, %arg1 : i32, i32
  }
  func.func @transform_2(%arg0: i32, %arg1: i32) -> (i32, i32) {
    %c0_i32 = arith.constant 0 : i32
    %c0_i32_0 = arith.constant 0 : i32
    return %arg0, %c0_i32 : i32, i32
  }
}

</mosaic_0001>

<llo_original>
// kernel: combined_loss.1
$region0: #{combined_loss.1}
  #allocation0 [shape = 'u32[]', space=smem, size = 0x4, offset = 0x4, fixed_abs, tag = 'smem constant byte address 0x4 - core index']
  #allocation1 [shape = 'u32[144,128]{1,0:T(1,128)}', space=vmem, size = 0x12000, scoped, tag = 'internal scratch']
  #allocation2 [shape = 'f32[8,128]{1,0:T(8,128)}', space=vmem, size = 0x1000, scoped, tag = 'scratch operand']
  #allocation3 [shape = 'f32[8,128]{1,0:T(8,128)}', space=vmem, size = 0x1000, scoped, tag = 'scratch operand']
  #allocation4 [shape = 'f32[8,128]{1,0:T(8,128)}', space=vmem, size = 0x1000, scoped, tag = 'scratch operand']
  #allocation5 [shape = 'f32[8,128]{1,0:T(8,128)}', space=vmem, size = 0x1000, scoped, tag = 'scratch operand']
  %s0 = inlined_call_operand.vmem [shape: f32[8,256], index: 0, kind: input, shape index: {}]
  %s1 = inlined_call_operand.vmem [shape: f32[8,256], index: 1, kind: input, shape index: {}]
  %s2 = inlined_call_operand.vmem [shape: f32[8,512], index: 2, kind: output, shape index: {}]
  %s3 = sld [smem:[#allocation0]]
  $region26: #{combined_loss.1} parent=0
    _
  %s5 = ssub.s32 1, %s3
  %s6 = scalar_select 0, %s5, %s3
  // Predicated region
  $region2: #{combined_loss.1} parent=0 // pred_check
    _
  $region3: #{combined_loss.1} parent=0 // pred_check_branch
    %8 = sbr.rel (0) target = $region5
  $region4: #{combined_loss.1} parent=0 // pred_region
    _
  $region5: #{combined_loss.1} parent=0 // pred_fallthru
    _
  // Predicated region
  $region6: #{combined_loss.1} parent=0 // pred_check
    _
  $region7: #{combined_loss.1} parent=0 // pred_check_branch
    %10 = sbr.rel (0) target = $region9
  $region8: #{combined_loss.1} parent=0 // pred_region
    _
  $region9: #{combined_loss.1} parent=0 // pred_fallthru
    _
  %p11 = scmp.eq.s32.totalorder 0, 0
  // Predicated region
  $region10: #{combined_loss.1} parent=0 // pred_check
    %p12 = pneg %p11
  $region11: #{combined_loss.1} parent=0 // pred_check_branch
    %14 = sbr.rel (%p12) target = $region13
  $region12: #{combined_loss.1} parent=0 // pred_region
    %15 = vst [vmem:[#allocation2] sm:$0xff] 0.0
    %16 = vst [vmem:[#allocation3] sm:$0xff] 0.0
    %17 = vst [vmem:[#allocation4] sm:$0xff] 0.0
    %18 = vst [vmem:[#allocation5] sm:$0xff] 0.0
  $region13: #{combined_loss.1} parent=0 // pred_fallthru
    _
  %v19 = vld [vmem:[%s0] sm:$0xff]
  %v20 = vld [vmem:[%s1] sm:$0xff]
  %v21 = vand.u32 2147483647, %v19
  %v22 = vsub.f32 0.0, %v21
  %v23 = vmul.f32 %v22, 1.442695
  %v24 = vpow.pop %v23
  %v25 = vadd.f32 %v24, 1.0
  %v26 = vrcp.pop %v25
  %v27 = vmul.f32 %v25, %v26
  %v28 = vsub.f32 2.0, %v27
  %v29 = vmul.f32 %v26, %v28
  %vm30 = vcmp.ge.f32.partialorder %v19, 0.0
  %v31 = vsub.f32 1.0, %v29
  %v32 = vsel %vm30, %v29, %v31
  %v33 = vmax.f32 %v19, 0.0
  %v34 = vmul.f32 %v19, %v20
  %v35 = vsub.f32 %v33, %v34
  %v36 = vlog2.pop %v25
  %v37 = vmul.f32 %v36, 0.6931472
  %v38 = vadd.f32 %v35, %v37
  %v39 = vld [vmem:[#allocation2] sm:$0xff]
  %v40 = vadd.f32 %v39, %v38
  %41 = vst [vmem:[#allocation2] sm:$0xff] %v40
  %v42 = vld [vmem:[#allocation3] sm:$0xff]
  %v43 = vmul.f32 %v32, %v20
  %v44 = vadd.f32 %v42, %v43
  %45 = vst [vmem:[#allocation3] sm:$0xff] %v44
  %v46 = vld [vmem:[#allocation4] sm:$0xff]
  %v47 = vadd.f32 %v46, %v32
  %48 = vst [vmem:[#allocation4] sm:$0xff] %v47
  %v49 = vld [vmem:[#allocation5] sm:$0xff]
  %v50 = vadd.f32 %v49, %v20
  %51 = vst [vmem:[#allocation5] sm:$0xff] %v50
  %v52 = vld [vmem:[%s0 + $0x8] sm:$0xff]
  %v53 = vld [vmem:[%s1 + $0x8] sm:$0xff]
  %v54 = vand.u32 2147483647, %v52
  %v55 = vsub.f32 0.0, %v54
  %v56 = vmul.f32 %v55, 1.442695
  %v57 = vpow.pop %v56
  %v58 = vadd.f32 %v57, 1.0
  %v59 = vrcp.pop %v58
  %v60 = vmul.f32 %v58, %v59
  %v61 = vsub.f32 2.0, %v60
  %v62 = vmul.f32 %v59, %v61
  %vm63 = vcmp.ge.f32.partialorder %v52, 0.0
  %v64 = vsub.f32 1.0, %v62
  %v65 = vsel %vm63, %v62, %v64
  %v66 = vmax.f32 %v52, 0.0
  %v67 = vmul.f32 %v52, %v53
  %v68 = vsub.f32 %v66, %v67
  %v69 = vlog2.pop %v58
  %v70 = vmul.f32 %v69, 0.6931472
  %v71 = vadd.f32 %v68, %v70
  %v72 = vld [vmem:[#allocation2] sm:$0xff]
  %v73 = vadd.f32 %v72, %v71
  %74 = vst [vmem:[#allocation2] sm:$0xff] %v73
  %v75 = vld [vmem:[#allocation3] sm:$0xff]
  %v76 = vmul.f32 %v65, %v53
  %v77 = vadd.f32 %v75, %v76
  %78 = vst [vmem:[#allocation3] sm:$0xff] %v77
  %v79 = vld [vmem:[#allocation4] sm:$0xff]
  %v80 = vadd.f32 %v79, %v65
  %81 = vst [vmem:[#allocation4] sm:$0xff] %v80
  %v82 = vld [vmem:[#allocation5] sm:$0xff]
  %v83 = vadd.f32 %v82, %v53
  %84 = vst [vmem:[#allocation5] sm:$0xff] %v83
  // Predicated region
  $region14: #{combined_loss.1} parent=0 // pred_check
    %p85 = pneg %p11
  $region15: #{combined_loss.1} parent=0 // pred_check_branch
    %87 = sbr.rel (%p85) target = $region17
  $region16: #{combined_loss.1} parent=0 // pred_region
    %v88 = vld [vmem:[#allocation2] sm:$0xff]
    %89 = vst [vmem:[%s2] sm:$0xff] %v88
    %v90 = vld [vmem:[#allocation3] sm:$0xff]
    %91 = vst [vmem:[%s2 + $0x8] sm:$0xff] %v90
    %v92 = vld [vmem:[#allocation4] sm:$0xff]
    %93 = vst [vmem:[%s2 + $0x10] sm:$0xff] %v92
    %v94 = vld [vmem:[#allocation5] sm:$0xff]
    %95 = vst [vmem:[%s2 + $0x18] sm:$0xff] %v94
  $region17: #{combined_loss.1} parent=0 // pred_fallthru
    _
  // Predicated region
  $region18: #{combined_loss.1} parent=0 // pred_check
    _
  $region19: #{combined_loss.1} parent=0 // pred_check_branch
    %97 = sbr.rel (0) target = $region21
  $region20: #{combined_loss.1} parent=0 // pred_region
    _
  $region21: #{combined_loss.1} parent=0 // pred_fallthru
    _
  // Predicated region
  $region22: #{combined_loss.1} parent=0 // pred_check
    _
  $region23: #{combined_loss.1} parent=0 // pred_check_branch
    %99 = sbr.rel (0) target = $region25
  $region24: #{combined_loss.1} parent=0 // pred_region
    _
  $region25: #{combined_loss.1} parent=0 // pred_fallthru
    _

</llo_original>
